<compile_context>
chip_gen: v7x
topology: tpu7x:2x2x1
jax: 0.10.0
libtpu: 0.0.40
codegen_flags: <defaults>
</compile_context>

<pallas_src>
import math

import jax
import jax.numpy as jnp
from jax.experimental import pallas as pl
from jax.experimental.pallas import tpu as pltpu

INPUT_STATE = 13
HIDDEN = 128
OUTPUT_STATE = 4
HEADS = 2 * OUTPUT_STATE          # fused [mu | pre_std]

_HALF_LOG_2PI = 0.5 * math.log(2.0 * math.pi)


def policy_kernel(x_ref, w1_ref, b1_ref, wh_ref, bh_ref, eps_ref, out_ref):
    # x_ref  : [13, TB]   (features on sublanes, batch on lanes)
    # w1_ref : [128, 13]  b1_ref : [128, 1]
    # wh_ref : [8, 128]   bh_ref : [8, 1]
    # eps_ref: [4, TB]    out_ref: [8, TB]  (rows 0:4 action, rows 4:8 log_prob)

    # fc1 + ReLU, transposed: h = W1^T x^T + b1  -> [128, TB]
    h = jnp.dot(w1_ref[...], x_ref[...],
                preferred_element_type=jnp.float32) + b1_ref[...]
    h = jnp.maximum(h, 0.0)

    # Fused heads: one [8,128] x [128,TB] matmul instead of two N=4 matmuls.
    heads = jnp.dot(wh_ref[...], h,
                    preferred_element_type=jnp.float32) + bh_ref[...]   # [8, TB]
    mu = heads[:OUTPUT_STATE, :]          # [4, TB]  (sublane slice)
    pre = heads[OUTPUT_STATE:, :]         # [4, TB]

    # softplus, numerically stable: max(x,0) + log1p(exp(-|x|))
    std = jnp.maximum(pre, 0.0) + jnp.log1p(jnp.exp(-jnp.abs(pre)))

    # Reparameterized sample: action = mu + std * eps
    eps = eps_ref[...]
    action = mu + std * eps

    # Normal(mu, std).log_prob(action); (action - mu)/std == eps exactly.
    log_prob = -0.5 * eps * eps - jnp.log(std) - _HALF_LOG_2PI

    # tanh squash + log-det correction; store halves directly (sublane stack,
    # no lane-axis concatenate).
    t = jnp.tanh(action)
    real_log_prob = log_prob - jnp.log(1.0 - t * t + 1e-7)

    out_ref[:OUTPUT_STATE, :] = t
    out_ref[OUTPUT_STATE:, :] = real_log_prob


def _round_up(n, m):
    return ((n + m - 1) // m) * m


def policy_forward(x, params, eps, block_b=None):
    """x: [B, 13], eps: [B, 4] (standard-normal rsample noise).

    Returns (real_action [B,4], real_log_prob [B,4]).
    """
    w1, b1, wmu, bmu, wstd, bstd = params
    B = x.shape[0]

    # Batch tile on the lane axis: either the full batch (small B, one tile)
    # or a multiple of 128 lanes, capped at 2048 so the [128, tb] hidden
    # activation (1 MiB f32) + double-buffered I/O stays far under even
    # v5e's 16 MiB scoped-VMEM default, while keeping >=2 grid steps for
    # v7x's two TensorCores when the batch is large.
    if block_b is None:
        if B <= 1024:
            block_b = B
        else:
            block_b = min(2048, _round_up(pl.cdiv(B, 2), 128))
    tb = block_b
    grid = (pl.cdiv(B, tb),)    # ragged last tile; no batch padding

    # Wrapper-side layout plumbing (one-time / tiny copies):
    x_t = x.T                                           # [13, B]
    eps_t = eps.T                                       # [4,  B]
    w1_t = w1.T                                         # [128, 13]
    b1_t = b1.T                                         # [128, 1]
    wh_t = jnp.concatenate([wmu, wstd], axis=1).T       # [8, 128]
    bh_t = jnp.concatenate([bmu, bstd], axis=1).T       # [8, 1]

    out = pl.pallas_call(
        policy_kernel,
        out_shape=jax.ShapeDtypeStruct((HEADS, B), jnp.float32),
        grid=grid,
        in_specs=[
            pl.BlockSpec((INPUT_STATE, tb), lambda i: (0, i)),     # x tile
            pl.BlockSpec((HIDDEN, INPUT_STATE), lambda i: (0, 0)), # w1^T (resident)
            pl.BlockSpec((HIDDEN, 1), lambda i: (0, 0)),           # b1^T (resident)
            pl.BlockSpec((HEADS, HIDDEN), lambda i: (0, 0)),       # fused head W^T
            pl.BlockSpec((HEADS, 1), lambda i: (0, 0)),            # fused head b^T
            pl.BlockSpec((OUTPUT_STATE, tb), lambda i: (0, i)),    # eps tile
        ],
        out_specs=pl.BlockSpec((HEADS, tb), lambda i: (0, i)),
        compiler_params=pltpu.CompilerParams(
            dimension_semantics=("parallel",)),
    )(x_t, w1_t, b1_t, wh_t, bh_t, eps_t)

    real_action = out[:OUTPUT_STATE, :].T      # [B, 4]
    real_log_prob = out[OUTPUT_STATE:, :].T    # [B, 4]
    return real_action, real_log_prob


def init_params(key):
    # Mirror torch.nn.Linear default init: U(-1/sqrt(fan_in), 1/sqrt(fan_in)),
    # stored as [in, out].
    k1, k2, k3, k4, k5, k6 = jax.random.split(key, 6)
    lim1 = 1.0 / jnp.sqrt(float(INPUT_STATE))
    lim2 = 1.0 / jnp.sqrt(float(HIDDEN))
    w1 = jax.random.uniform(k1, (INPUT_STATE, HIDDEN), jnp.float32, -lim1, lim1)
    b1 = jax.random.uniform(k2, (1, HIDDEN), jnp.float32, -lim1, lim1)
    wmu = jax.random.uniform(k3, (HIDDEN, OUTPUT_STATE), jnp.float32, -lim2, lim2)
    bmu = jax.random.uniform(k4, (1, OUTPUT_STATE), jnp.float32, -lim2, lim2)
    wstd = jax.random.uniform(k5, (HIDDEN, OUTPUT_STATE), jnp.float32, -lim2, lim2)
    bstd = jax.random.uniform(k6, (1, OUTPUT_STATE), jnp.float32, -lim2, lim2)
    return (w1, b1, wmu, bmu, wstd, bstd)


def reference_forward(x, params, eps):
    w1, b1, wmu, bmu, wstd, bstd = params
    h = jnp.maximum(x @ w1 + b1, 0.0)
    mu = h @ wmu + bmu
    std = jax.nn.softplus(h @ wstd + bstd)
    action = mu + std * eps
    z = (action - mu) / std
    log_prob = -0.5 * z * z - jnp.log(std) - 0.5 * jnp.log(2.0 * jnp.pi)
    t = jnp.tanh(action)
    return t, log_prob - jnp.log(1.0 - t * t + 1e-7)


if __name__ == "__main__":
    key = jax.random.PRNGKey(0)
    kp, kx, ke, kx2, ke2 = jax.random.split(key, 5)

    params = init_params(kp)

    # Tiny single-tile batch (matches the PyTorch module's typical usage).
    B = 8
    x = jax.random.normal(kx, (B, INPUT_STATE), jnp.float32)
    eps = jax.random.normal(ke, (B, OUTPUT_STATE), jnp.float32)  # rsample noise
    act, lp = policy_forward(x, params, eps)
    jax.block_until_ready((act, lp))
    ref_act, ref_lp = reference_forward(x, params, eps)
    assert jnp.allclose(act, ref_act, atol=1e-5, rtol=1e-5)
    assert jnp.allclose(lp, ref_lp, atol=1e-4, rtol=1e-4)

    # Multi-step grid with a ragged last tile (exercises the pipelined path).
    B2 = 600
    x2 = jax.random.normal(kx2, (B2, INPUT_STATE), jnp.float32)
    eps2 = jax.random.normal(ke2, (B2, OUTPUT_STATE), jnp.float32)
    act2, lp2 = policy_forward(x2, params, eps2, block_b=256)
    jax.block_until_ready((act2, lp2))
    ref_act2, ref_lp2 = reference_forward(x2, params, eps2)
    assert jnp.allclose(act2, ref_act2, atol=1e-5, rtol=1e-5)
    assert jnp.allclose(lp2, ref_lp2, atol=1e-4, rtol=1e-4)

    print("KERNEL_OK")
</pallas_src>

<mosaic_0001>
module attributes {stable_mosaic.version = 11 : i64} {
  func.func @policy_kernel(%arg0: i32, %arg1: memref<13x8xf32, #tpu.memory_space<vmem>>, %arg2: memref<128x13xf32, #tpu.memory_space<vmem>>, %arg3: memref<128x1xf32, #tpu.memory_space<vmem>>, %arg4: memref<8x128xf32, #tpu.memory_space<vmem>>, %arg5: memref<8x1xf32, #tpu.memory_space<vmem>>, %arg6: memref<4x8xf32, #tpu.memory_space<vmem>>, %arg7: memref<8x8xf32, #tpu.memory_space<vmem>>) attributes {dimension_semantics = [#tpu.dimension_semantics<parallel>], iteration_bounds = array<i64: 1>, scalar_prefetch = 0 : i64, scratch_operands = 0 : i64, tpu.core_type = #tpu.core_type<tc>, window_params = [{transform_indices = @transform_0, window_bounds = array<i64: 13, 8>}, {pipeline_mode = #tpu.pipeline_mode<synchronous>, transform_indices = @transform_1, window_bounds = array<i64: 128, 13>}, {pipeline_mode = #tpu.pipeline_mode<synchronous>, transform_indices = @transform_2, window_bounds = array<i64: 128, 1>}, {pipeline_mode = #tpu.pipeline_mode<synchronous>, transform_indices = @transform_3, window_bounds = array<i64: 8, 128>}, {pipeline_mode = #tpu.pipeline_mode<synchronous>, transform_indices = @transform_4, window_bounds = array<i64: 8, 1>}, {transform_indices = @transform_5, window_bounds = array<i64: 4, 8>}, {transform_indices = @transform_6, window_bounds = array<i64: 8, 8>}]} {
    %c0 = arith.constant 0 : index
    %c0_0 = arith.constant 0 : index
    %0 = vector.load %arg2[%c0, %c0_0] : memref<128x13xf32, #tpu.memory_space<vmem>>, vector<128x13xf32>
    %c0_1 = arith.constant 0 : index
    %c0_2 = arith.constant 0 : index
    %1 = vector.load %arg1[%c0_1, %c0_2] : memref<13x8xf32, #tpu.memory_space<vmem>>, vector<13x8xf32>
    %cst = arith.constant dense<0.000000e+00> : vector<128x8xf32>
    %2 = tpu.matmul %0, %1, %cst {dimension_numbers = #tpu.dot_dimension_numbers<[1], [0], [0], [1], [0, 0, 1, 1], [], []>} : vector<128x13xf32>, vector<13x8xf32>, vector<128x8xf32> -> vector<128x8xf32>
    %c0_3 = arith.constant 0 : index
    %c0_4 = arith.constant 0 : index
    %3 = vector.load %arg3[%c0_3, %c0_4] : memref<128x1xf32, #tpu.memory_space<vmem>>, vector<128x1xf32>
    %4 = vector.broadcast %3 : vector<128x1xf32> to vector<128x8xf32>
    %5 = arith.addf %2, %4 : vector<128x8xf32>
    %cst_5 = arith.constant 0.000000e+00 : f32
    %6 = vector.broadcast %cst_5 : f32 to vector<128x8xf32>
    %7 = arith.maximumf %5, %6 : vector<128x8xf32>
    %c0_6 = arith.constant 0 : index
    %c0_7 = arith.constant 0 : index
    %8 = vector.load %arg4[%c0_6, %c0_7] : memref<8x128xf32, #tpu.memory_space<vmem>>, vector<8x128xf32>
    %cst_8 = arith.constant dense<0.000000e+00> : vector<8x8xf32>
    %9 = tpu.matmul %8, %7, %cst_8 {dimension_numbers = #tpu.dot_dimension_numbers<[1], [0], [0], [1], [0, 0, 1, 1], [], []>} : vector<8x128xf32>, vector<128x8xf32>, vector<8x8xf32> -> vector<8x8xf32>
    %c0_9 = arith.constant 0 : index
    %c0_10 = arith.constant 0 : index
    %10 = vector.load %arg5[%c0_9, %c0_10] : memref<8x1xf32, #tpu.memory_space<vmem>>, vector<8x1xf32>
    %11 = vector.broadcast %10 : vector<8x1xf32> to vector<8x8xf32>
    %12 = arith.addf %9, %11 : vector<8x8xf32>
    %13 = vector.extract_strided_slice %12 {offsets = [0, 0], sizes = [4, 8], strides = [1, 1]} : vector<8x8xf32> to vector<4x8xf32>
    %14 = vector.extract_strided_slice %12 {offsets = [4, 0], sizes = [4, 8], strides = [1, 1]} : vector<8x8xf32> to vector<4x8xf32>
    %cst_11 = arith.constant 0.000000e+00 : f32
    %15 = vector.broadcast %cst_11 : f32 to vector<4x8xf32>
    %16 = arith.maximumf %14, %15 : vector<4x8xf32>
    %17 = math.absf %14 : vector<4x8xf32>
    %cst_12 = arith.constant 0.000000e+00 : f32
    %18 = vector.broadcast %cst_12 : f32 to vector<4x8xf32>
    %19 = arith.subf %18, %17 : vector<4x8xf32>
    %20 = math.exp %19 : vector<4x8xf32>
    %21 = math.log1p %20 : vector<4x8xf32>
    %22 = arith.addf %16, %21 : vector<4x8xf32>
    %c0_13 = arith.constant 0 : index
    %c0_14 = arith.constant 0 : index
    %23 = vector.load %arg6[%c0_13, %c0_14] : memref<4x8xf32, #tpu.memory_space<vmem>>, vector<4x8xf32>
    %24 = arith.mulf %22, %23 : vector<4x8xf32>
    %25 = arith.addf %13, %24 : vector<4x8xf32>
    %cst_15 = arith.constant -5.000000e-01 : f32
    %26 = vector.broadcast %cst_15 : f32 to vector<4x8xf32>
    %27 = arith.mulf %26, %23 : vector<4x8xf32>
    %28 = arith.mulf %27, %23 : vector<4x8xf32>
    %29 = math.log %22 : vector<4x8xf32>
    %30 = arith.subf %28, %29 : vector<4x8xf32>
    %cst_16 = arith.constant 0.918938517 : f32
    %31 = vector.broadcast %cst_16 : f32 to vector<4x8xf32>
    %32 = arith.subf %30, %31 : vector<4x8xf32>
    %33 = math.tanh %25 : vector<4x8xf32>
    %34 = arith.mulf %33, %33 : vector<4x8xf32>
    %cst_17 = arith.constant 1.000000e+00 : f32
    %35 = vector.broadcast %cst_17 : f32 to vector<4x8xf32>
    %36 = arith.subf %35, %34 : vector<4x8xf32>
    %cst_18 = arith.constant 1.000000e-07 : f32
    %37 = vector.broadcast %cst_18 : f32 to vector<4x8xf32>
    %38 = arith.addf %36, %37 : vector<4x8xf32>
    %39 = math.log %38 : vector<4x8xf32>
    %40 = arith.subf %32, %39 : vector<4x8xf32>
    %c0_19 = arith.constant 0 : index
    %c0_20 = arith.constant 0 : index
    %41 = vector.load %arg7[%c0_19, %c0_20] : memref<8x8xf32, #tpu.memory_space<vmem>>, vector<4x8xf32>
    tpu.vector_store %arg7[%c0_19, %c0_20], %33 {strides = array<i32>} : memref<8x8xf32, #tpu.memory_space<vmem>>, vector<4x8xf32>,
    %c4 = arith.constant 4 : index
    %c0_21 = arith.constant 0 : index
    %42 = vector.load %arg7[%c4, %c0_21] : memref<8x8xf32, #tpu.memory_space<vmem>>, vector<4x8xf32>
    tpu.vector_store %arg7[%c4, %c0_21], %40 {strides = array<i32>} : memref<8x8xf32, #tpu.memory_space<vmem>>, vector<4x8xf32>,
    return
  }
  func.func @transform_0(%arg0: i32) -> (i32, i32) {
    %c0_i32 = arith.constant 0 : i32
    %c0_i32_0 = arith.constant 0 : i32
    return %c0_i32, %arg0 : i32, i32
  }
  func.func @transform_1(%arg0: i32) -> (i32, i32) {
    %c0_i32 = arith.constant 0 : i32
    %c0_i32_0 = arith.constant 0 : i32
    %c0_i32_1 = arith.constant 0 : i32
    return %c0_i32, %c0_i32_0 : i32, i32
  }
  func.func @transform_2(%arg0: i32) -> (i32, i32) {
    %c0_i32 = arith.constant 0 : i32
    %c0_i32_0 = arith.constant 0 : i32
    %c0_i32_1 = arith.constant 0 : i32
    return %c0_i32, %c0_i32_0 : i32, i32
  }
  func.func @transform_3(%arg0: i32) -> (i32, i32) {
    %c0_i32 = arith.constant 0 : i32
    %c0_i32_0 = arith.constant 0 : i32
    %c0_i32_1 = arith.constant 0 : i32
    return %c0_i32, %c0_i32_0 : i32, i32
  }
  func.func @transform_4(%arg0: i32) -> (i32, i32) {
    %c0_i32 = arith.constant 0 : i32
    %c0_i32_0 = arith.constant 0 : i32
    %c0_i32_1 = arith.constant 0 : i32
    return %c0_i32, %c0_i32_0 : i32, i32
  }
  func.func @transform_5(%arg0: i32) -> (i32, i32) {
    %c0_i32 = arith.constant 0 : i32
    %c0_i32_0 = arith.constant 0 : i32
    return %c0_i32, %arg0 : i32, i32
  }
  func.func @transform_6(%arg0: i32) -> (i32, i32) {
    %c0_i32 = arith.constant 0 : i32
    %c0_i32_0 = arith.constant 0 : i32
    return %c0_i32, %arg0 : i32, i32
  }
}

</mosaic_0001>

<llo_original>
// kernel: tpu_custom_call.1
$region0: #{tpu_custom_call.1}
  #allocation0 [shape = 'u32[]', space=smem, size = 0x4, offset = 0x4, fixed_abs, tag = 'smem constant byte address 0x4 - core index']
  #allocation1 [shape = 'u32[144,128]{1,0:T(1,128)}', space=vmem, size = 0x12000, scoped, tag = 'internal scratch']
  %s0 = inlined_call_operand.vmem [shape: f32[13,8], index: 0, kind: input, shape index: {}]
  %s1 = inlined_call_operand.vmem [shape: f32[128,13], index: 1, kind: input, shape index: {}]
  %s2 = inlined_call_operand.vmem [shape: f32[128,1], index: 2, kind: input, shape index: {}]
  %s3 = inlined_call_operand.vmem [shape: f32[8,128], index: 3, kind: input, shape index: {}]
  %s4 = inlined_call_operand.vmem [shape: f32[8,1], index: 4, kind: input, shape index: {}]
  %s5 = inlined_call_operand.vmem [shape: f32[4,8], index: 5, kind: input, shape index: {}]
  %s6 = inlined_call_operand.hbm [shape: f32[8,8], index: 6, kind: output, shape index: {}]
  %s7 = sld [smem:[#allocation0]]
  $region34: #{tpu_custom_call.1} parent=0
    _
  %s9 = ssub.s32 1, %s7
  %s10 = scalar_select 0, %s9, %s7
  $region1: #{tpu_custom_call.1} parent=0
    #allocation2 [shape = 'u8[4096]{0}', space=vmem, size = 0x1000, scoped, tag = 'output window, operand 0, single buffered']
    #allocation3 [shape = 's32[1]{0}', space=sflag, size = 0x4, scoped, tag = 'scoped memory for tpu_custom_call.1']
    %11 = vsyncpa [#allocation3], 0
    // Predicated region
    $region2: #{tpu_custom_call.1} parent=1 // pred_check
      _
    $region3: #{tpu_custom_call.1} parent=1 // pred_check_branch
      %13 = sbr.rel (0) target = $region5
    $region4: #{tpu_custom_call.1} parent=1 // pred_region
      _
    $region5: #{tpu_custom_call.1} parent=1 // pred_fallthru
      _
    // Predicated region
    $region6: #{tpu_custom_call.1} parent=1 // pred_check
      _
    $region7: #{tpu_custom_call.1} parent=1 // pred_check_branch
      %15 = sbr.rel (0) target = $region9
    $region8: #{tpu_custom_call.1} parent=1 // pred_region
      _
    $region9: #{tpu_custom_call.1} parent=1 // pred_fallthru
      _
    // Predicated region
    $region10: #{tpu_custom_call.1} parent=1 // pred_check
      _
    $region11: #{tpu_custom_call.1} parent=1 // pred_check_branch
      %17 = sbr.rel (0) target = $region13
    $region12: #{tpu_custom_call.1} parent=1 // pred_region
      _
    $region13: #{tpu_custom_call.1} parent=1 // pred_fallthru
      _
    // Predicated region
    $region14: #{tpu_custom_call.1} parent=1 // pred_check
      _
    $region15: #{tpu_custom_call.1} parent=1 // pred_check_branch
      %19 = sbr.rel (0) target = $region17
    $region16: #{tpu_custom_call.1} parent=1 // pred_region
      _
    $region17: #{tpu_custom_call.1} parent=1 // pred_fallthru
      _
    // Predicated region
    $region18: #{tpu_custom_call.1} parent=1 // pred_check
      _
    $region19: #{tpu_custom_call.1} parent=1 // pred_check_branch
      %21 = sbr.rel (0) target = $region21
    $region20: #{tpu_custom_call.1} parent=1 // pred_region
      _
    $region21: #{tpu_custom_call.1} parent=1 // pred_fallthru
      _
    // Predicated region
    $region22: #{tpu_custom_call.1} parent=1 // pred_check
      _
    $region23: #{tpu_custom_call.1} parent=1 // pred_check_branch
      %23 = sbr.rel (0) target = $region25
    $region24: #{tpu_custom_call.1} parent=1 // pred_region
      _
    $region25: #{tpu_custom_call.1} parent=1 // pred_fallthru
      _
    %v24 = vld [vmem:[%s1] sm:$0xff]
    %v25 = vld [vmem:[%s1 + $0x8] sm:$0xff]
    %v26 = vld [vmem:[%s1 + $0x10] sm:$0xff]
    %v27 = vld [vmem:[%s1 + $0x18] sm:$0xff]
    %v28 = vld [vmem:[%s1 + $0x20] sm:$0xff]
    %v29 = vld [vmem:[%s1 + $0x28] sm:$0xff]
    %v30 = vld [vmem:[%s1 + $0x30] sm:$0xff]
    %v31 = vld [vmem:[%s1 + $0x38] sm:$0xff]
    %v32 = vld [vmem:[%s1 + $0x40] sm:$0xff]
    %v33 = vld [vmem:[%s1 + $0x48] sm:$0xff]
    %v34 = vld [vmem:[%s1 + $0x50] sm:$0xff]
    %v35 = vld [vmem:[%s1 + $0x58] sm:$0xff]
    %v36 = vld [vmem:[%s1 + $0x60] sm:$0xff]
    %v37 = vld [vmem:[%s1 + $0x68] sm:$0xff]
    %v38 = vld [vmem:[%s1 + $0x70] sm:$0xff]
    %v39 = vld [vmem:[%s1 + $0x78] sm:$0xff]
    %v40 = vld [vmem:[%s0] sm:$0xff]
    %v41 = vld [vmem:[%s0 + $0x8] sm:$0x1f]
    %v42 = vld [vmem:[%s2] sm:$0xff]
    %v43 = vld [vmem:[%s2 + $0x8] sm:$0xff]
    %v44 = vld [vmem:[%s2 + $0x10] sm:$0xff]
    %v45 = vld [vmem:[%s2 + $0x18] sm:$0xff]
    %v46 = vld [vmem:[%s2 + $0x20] sm:$0xff]
    %v47 = vld [vmem:[%s2 + $0x28] sm:$0xff]
    %v48 = vld [vmem:[%s2 + $0x30] sm:$0xff]
    %v49 = vld [vmem:[%s2 + $0x38] sm:$0xff]
    %v50 = vld [vmem:[%s2 + $0x40] sm:$0xff]
    %v51 = vld [vmem:[%s2 + $0x48] sm:$0xff]
    %v52 = vld [vmem:[%s2 + $0x50] sm:$0xff]
    %v53 = vld [vmem:[%s2 + $0x58] sm:$0xff]
    %v54 = vld [vmem:[%s2 + $0x60] sm:$0xff]
    %v55 = vld [vmem:[%s2 + $0x68] sm:$0xff]
    %v56 = vld [vmem:[%s2 + $0x70] sm:$0xff]
    %v57 = vld [vmem:[%s2 + $0x78] sm:$0xff]
    %59 = vset.pattern.permute.xlu0 0
    %60 = vperm.xlu0 %59, %v42
    %v61 = vpop.permute.xlu0 %60
    %64 = vset.pattern.permute.xlu0 0
    %65 = vperm.xlu0 %64, %v43
    %v66 = vpop.permute.xlu0 %65
    %69 = vset.pattern.permute.xlu0 0
    %70 = vperm.xlu0 %69, %v44
    %v71 = vpop.permute.xlu0 %70
    %74 = vset.pattern.permute.xlu0 0
    %75 = vperm.xlu0 %74, %v45
    %v76 = vpop.permute.xlu0 %75
    %79 = vset.pattern.permute.xlu0 0
    %80 = vperm.xlu0 %79, %v46
    %v81 = vpop.permute.xlu0 %80
    %84 = vset.pattern.permute.xlu0 0
    %85 = vperm.xlu0 %84, %v47
    %v86 = vpop.permute.xlu0 %85
    %89 = vset.pattern.permute.xlu0 0
    %90 = vperm.xlu0 %89, %v48
    %v91 = vpop.permute.xlu0 %90
    %94 = vset.pattern.permute.xlu0 0
    %95 = vperm.xlu0 %94, %v49
    %v96 = vpop.permute.xlu0 %95
    %99 = vset.pattern.permute.xlu0 0
    %100 = vperm.xlu0 %99, %v50
    %v101 = vpop.permute.xlu0 %100
    %104 = vset.pattern.permute.xlu0 0
    %105 = vperm.xlu0 %104, %v51
    %v106 = vpop.permute.xlu0 %105
    %109 = vset.pattern.permute.xlu0 0
    %110 = vperm.xlu0 %109, %v52
    %v111 = vpop.permute.xlu0 %110
    %114 = vset.pattern.permute.xlu0 0
    %115 = vperm.xlu0 %114, %v53
    %v116 = vpop.permute.xlu0 %115
    %119 = vset.pattern.permute.xlu0 0
    %120 = vperm.xlu0 %119, %v54
    %v121 = vpop.permute.xlu0 %120
    %124 = vset.pattern.permute.xlu0 0
    %125 = vperm.xlu0 %124, %v55
    %v126 = vpop.permute.xlu0 %125
    %129 = vset.pattern.permute.xlu0 0
    %130 = vperm.xlu0 %129, %v56
    %v131 = vpop.permute.xlu0 %130
    %134 = vset.pattern.permute.xlu0 0
    %135 = vperm.xlu0 %134, %v57
    %v136 = vpop.permute.xlu0 %135
    %vm138 = vcmask 105472
    %v140 = vsel %vm138, %v24, 0
    %v143 = vsel %vm138, %v25, 0
    %v146 = vsel %vm138, %v26, 0
    %v149 = vsel %vm138, %v27, 0
    %v152 = vsel %vm138, %v28, 0
    %v155 = vsel %vm138, %v29, 0
    %v158 = vsel %vm138, %v30, 0
    %v161 = vsel %vm138, %v31, 0
    %v164 = vsel %vm138, %v32, 0
    %v167 = vsel %vm138, %v33, 0
    %v170 = vsel %vm138, %v34, 0
    %v173 = vsel %vm138, %v35, 0
    %v176 = vsel %vm138, %v36, 0
    %v179 = vsel %vm138, %v37, 0
    %v182 = vsel %vm138, %v38, 0
    %v185 = vsel %vm138, %v39, 0
    %vm187 = vcmask 1044480
    %v189 = vsel %vm187, %v41, 0
    %191 = vmatprep.subr.mxu0 0.0
    %192 = vmatpush1.msra.mxu0 %v40
    %193 = vmatprep.subr.mxu0 0.0
    %194 = vmatpush1.msra.mxu0 %v189
    %195 = vmatprep.subr.mxu0 0.0
    %196 = vmatpush1.msra.mxu0 0.0
    %197 = vmatprep.subr.mxu0 0.0
    %198 = vmatpush1.msra.mxu0 0.0
    %199 = vmatprep.subr.mxu0 0.0
    %200 = vmatpush1.msra.mxu0 0.0
    %201 = vmatprep.subr.mxu0 0.0
    %202 = vmatpush1.msra.mxu0 0.0
    %203 = vmatprep.subr.mxu0 0.0
    %204 = vmatpush1.msra.mxu0 0.0
    %205 = vmatprep.subr.mxu0 0.0
    %206 = vmatpush1.msra.mxu0 0.0
    %207 = vmatprep.subr.mxu0 0.0
    %208 = vmatpush1.msra.mxu0 0.0
    %209 = vmatprep.subr.mxu0 0.0
    %210 = vmatpush1.msra.mxu0 0.0
    %211 = vmatprep.subr.mxu0 0.0
    %212 = vmatpush1.msra.mxu0 0.0
    %213 = vmatprep.subr.mxu0 0.0
    %214 = vmatpush1.msra.mxu0 0.0
    %215 = vmatprep.subr.mxu0 0.0
    %216 = vmatpush1.msra.mxu0 0.0
    %217 = vmatprep.subr.mxu0 0.0
    %218 = vmatpush1.msra.mxu0 0.0
    %219 = vmatprep.subr.mxu0 0.0
    %220 = vmatpush1.msra.mxu0 0.0
    %221 = vmatprep.subr.mxu0 0.0
    %222 = vmatpush1.msra.mxu0 0.0
    %223 = vmatprep.subr.mxu0 0.0
    %224 = vmatpush1.msra.mxu0 0.0
    %225 = vmatprep.subr.mxu0 0.0
    %226 = vmatpush1.msra.mxu0 0.0
    %227 = vmatprep.subr.mxu0 0.0
    %228 = vmatpush1.msra.mxu0 0.0
    %229 = vmatprep.subr.mxu0 0.0
    %230 = vmatpush1.msra.mxu0 0.0
    %231 = vmatprep.subr.mxu0 0.0
    %232 = vmatpush1.msra.mxu0 0.0
    %233 = vmatprep.subr.mxu0 0.0
    %234 = vmatpush1.msra.mxu0 0.0
    %235 = vmatprep.subr.mxu0 0.0
    %236 = vmatpush1.msra.mxu0 0.0
    %237 = vmatprep.subr.mxu0 0.0
    %238 = vmatpush1.msra.mxu0 0.0
    %239 = vmatprep.subr.mxu0 0.0
    %240 = vmatpush1.msra.mxu0 0.0
    %241 = vmatprep.subr.mxu0 0.0
    %242 = vmatpush1.msra.mxu0 0.0
    %243 = vmatprep.subr.mxu0 0.0
    %244 = vmatpush1.msra.mxu0 0.0
    %245 = vmatprep.subr.mxu0 0.0
    %246 = vmatpush1.msra.mxu0 0.0
    %247 = vmatprep.subr.mxu0 0.0
    %248 = vmatpush1.msra.mxu0 0.0
    %249 = vmatprep.subr.mxu0 0.0
    %250 = vmatpush1.msra.mxu0 0.0
    %251 = vmatprep.subr.mxu0 0.0
    %252 = vmatpush1.msra.mxu0 0.0
    %253 = vmatprep.subr.mxu0 0.0
    %254 = vmatpush1.msra.mxu0 0.0
    %255 = vmatprep.mubr.f32.mxu0 0.0
    %256 = vmatmul.mubr.f32.gmra.mrb[0].mxu0 %v140
    %v257 = vpop.f32.mrb[0].mxu0
    %v258 = vadd.f32 %v61, %v257
    %v259 = vpop.f32.mrb[0].mxu0
    %260 = vmatprep.mubr.f32.mxu0 0.0
    %261 = vmatmul.mubr.f32.gmra.mrb[0].mxu0 %v143
    %v262 = vpop.f32.mrb[0].mxu0
    %v263 = vadd.f32 %v66, %v262
    %v264 = vpop.f32.mrb[0].mxu0
    %265 = vmatprep.mubr.f32.mxu0 0.0
    %266 = vmatmul.mubr.f32.gmra.mrb[0].mxu0 %v146
    %v267 = vpop.f32.mrb[0].mxu0
    %v268 = vadd.f32 %v71, %v267
    %v269 = vpop.f32.mrb[0].mxu0
    %270 = vmatprep.mubr.f32.mxu0 0.0
    %271 = vmatmul.mubr.f32.gmra.mrb[0].mxu0 %v149
    %v272 = vpop.f32.mrb[0].mxu0
    %v273 = vadd.f32 %v76, %v272
    %v274 = vpop.f32.mrb[0].mxu0
    %275 = vmatprep.mubr.f32.mxu0 0.0
    %276 = vmatmul.mubr.f32.gmra.mrb[0].mxu0 %v152
    %v277 = vpop.f32.mrb[0].mxu0
    %v278 = vadd.f32 %v81, %v277
    %v279 = vpop.f32.mrb[0].mxu0
    %280 = vmatprep.mubr.f32.mxu0 0.0
    %281 = vmatmul.mubr.f32.gmra.mrb[0].mxu0 %v155
    %v282 = vpop.f32.mrb[0].mxu0
    %v283 = vadd.f32 %v86, %v282
    %v284 = vpop.f32.mrb[0].mxu0
    %285 = vmatprep.mubr.f32.mxu0 0.0
    %286 = vmatmul.mubr.f32.gmra.mrb[0].mxu0 %v158
    %v287 = vpop.f32.mrb[0].mxu0
    %v288 = vadd.f32 %v91, %v287
    %v289 = vpop.f32.mrb[0].mxu0
    %290 = vmatprep.mubr.f32.mxu0 0.0
    %291 = vmatmul.mubr.f32.gmra.mrb[0].mxu0 %v161
    %v292 = vpop.f32.mrb[0].mxu0
    %v293 = vadd.f32 %v96, %v292
    %v294 = vpop.f32.mrb[0].mxu0
    %295 = vmatprep.mubr.f32.mxu0 0.0
    %296 = vmatmul.mubr.f32.gmra.mrb[0].mxu0 %v164
    %v297 = vpop.f32.mrb[0].mxu0
    %v298 = vadd.f32 %v101, %v297
    %v299 = vpop.f32.mrb[0].mxu0
    %300 = vmatprep.mubr.f32.mxu0 0.0
    %301 = vmatmul.mubr.f32.gmra.mrb[0].mxu0 %v167
    %v302 = vpop.f32.mrb[0].mxu0
    %v303 = vadd.f32 %v106, %v302
    %v304 = vpop.f32.mrb[0].mxu0
    %305 = vmatprep.mubr.f32.mxu0 0.0
    %306 = vmatmul.mubr.f32.gmra.mrb[0].mxu0 %v170
    %v307 = vpop.f32.mrb[0].mxu0
    %v308 = vadd.f32 %v111, %v307
    %v309 = vpop.f32.mrb[0].mxu0
    %310 = vmatprep.mubr.f32.mxu0 0.0
    %311 = vmatmul.mubr.f32.gmra.mrb[0].mxu0 %v173
    %v312 = vpop.f32.mrb[0].mxu0
    %v313 = vadd.f32 %v116, %v312
    %v314 = vpop.f32.mrb[0].mxu0
    %315 = vmatprep.mubr.f32.mxu0 0.0
    %316 = vmatmul.mubr.f32.gmra.mrb[0].mxu0 %v176
    %v317 = vpop.f32.mrb[0].mxu0
    %v318 = vadd.f32 %v121, %v317
    %v319 = vpop.f32.mrb[0].mxu0
    %320 = vmatprep.mubr.f32.mxu0 0.0
    %321 = vmatmul.mubr.f32.gmra.mrb[0].mxu0 %v179
    %v322 = vpop.f32.mrb[0].mxu0
    %v323 = vadd.f32 %v126, %v322
    %v324 = vpop.f32.mrb[0].mxu0
    %325 = vmatprep.mubr.f32.mxu0 0.0
    %326 = vmatmul.mubr.f32.gmra.mrb[0].mxu0 %v182
    %v327 = vpop.f32.mrb[0].mxu0
    %v328 = vadd.f32 %v131, %v327
    %v329 = vpop.f32.mrb[0].mxu0
    %330 = vmatprep.mubr.f32.mxu0 0.0
    %331 = vmatmul.mubr.f32.gmra.mrb[0].mxu0 %v185
    %v332 = vpop.f32.mrb[0].mxu0
    %v333 = vadd.f32 %v136, %v332
    %v334 = vpop.f32.mrb[0].mxu0
    %335 = vdwg.mxu0
    %v336 = vmax.f32 %v258, 0.0
    %v337 = vmax.f32 %v263, 0.0
    %v338 = vmax.f32 %v268, 0.0
    %v339 = vmax.f32 %v273, 0.0
    %v340 = vmax.f32 %v278, 0.0
    %v341 = vmax.f32 %v283, 0.0
    %v342 = vmax.f32 %v288, 0.0
    %v343 = vmax.f32 %v293, 0.0
    %v344 = vmax.f32 %v298, 0.0
    %v345 = vmax.f32 %v303, 0.0
    %v346 = vmax.f32 %v308, 0.0
    %v347 = vmax.f32 %v313, 0.0
    %v348 = vmax.f32 %v318, 0.0
    %v349 = vmax.f32 %v323, 0.0
    %v350 = vmax.f32 %v328, 0.0
    %v351 = vmax.f32 %v333, 0.0
    %v352 = vld [vmem:[%s3] sm:$0xff]
    %v353 = vld [vmem:[%s4] sm:$0xff]
    %355 = vset.pattern.permute.xlu0 0
    %356 = vperm.xlu0 %355, %v353
    %v357 = vpop.permute.xlu0 %356
    %359 = vmatprep.subr.mxu0 0.0
    %360 = vmatpush1.msra.mxu0 %v336
    %361 = vmatprep.subr.mxu0 0.0
    %362 = vmatpush1.msra.mxu0 %v337
    %363 = vmatprep.subr.mxu0 0.0
    %364 = vmatpush1.msra.mxu0 %v338
    %365 = vmatprep.subr.mxu0 0.0
    %366 = vmatpush1.msra.mxu0 %v339
    %367 = vmatprep.subr.mxu0 0.0
    %368 = vmatpush1.msra.mxu0 %v340
    %369 = vmatprep.subr.mxu0 0.0
    %370 = vmatpush1.msra.mxu0 %v341
    %371 = vmatprep.subr.mxu0 0.0
    %372 = vmatpush1.msra.mxu0 %v342
    %373 = vmatprep.subr.mxu0 0.0
    %374 = vmatpush1.msra.mxu0 %v343
    %375 = vmatprep.subr.mxu0 0.0
    %376 = vmatpush1.msra.mxu0 %v344
    %377 = vmatprep.subr.mxu0 0.0
    %378 = vmatpush1.msra.mxu0 %v345
    %379 = vmatprep.subr.mxu0 0.0
    %380 = vmatpush1.msra.mxu0 %v346
    %381 = vmatprep.subr.mxu0 0.0
    %382 = vmatpush1.msra.mxu0 %v347
    %383 = vmatprep.subr.mxu0 0.0
    %384 = vmatpush1.msra.mxu0 %v348
    %385 = vmatprep.subr.mxu0 0.0
    %386 = vmatpush1.msra.mxu0 %v349
    %387 = vmatprep.subr.mxu0 0.0
    %388 = vmatpush1.msra.mxu0 %v350
    %389 = vmatprep.subr.mxu0 0.0
    %390 = vmatpush1.msra.mxu0 %v351
    %391 = vmatprep.subr.mxu0 0.0
    %392 = vmatpush1.msra.mxu0 0.0
    %393 = vmatprep.subr.mxu0 0.0
    %394 = vmatpush1.msra.mxu0 0.0
    %395 = vmatprep.subr.mxu0 0.0
    %396 = vmatpush1.msra.mxu0 0.0
    %397 = vmatprep.subr.mxu0 0.0
    %398 = vmatpush1.msra.mxu0 0.0
    %399 = vmatprep.subr.mxu0 0.0
    %400 = vmatpush1.msra.mxu0 0.0
    %401 = vmatprep.subr.mxu0 0.0
    %402 = vmatpush1.msra.mxu0 0.0
    %403 = vmatprep.subr.mxu0 0.0
    %404 = vmatpush1.msra.mxu0 0.0
    %405 = vmatprep.subr.mxu0 0.0
    %406 = vmatpush1.msra.mxu0 0.0
    %407 = vmatprep.subr.mxu0 0.0
    %408 = vmatpush1.msra.mxu0 0.0
    %409 = vmatprep.subr.mxu0 0.0
    %410 = vmatpush1.msra.mxu0 0.0
    %411 = vmatprep.subr.mxu0 0.0
    %412 = vmatpush1.msra.mxu0 0.0
    %413 = vmatprep.subr.mxu0 0.0
    %414 = vmatpush1.msra.mxu0 0.0
    %415 = vmatprep.subr.mxu0 0.0
    %416 = vmatpush1.msra.mxu0 0.0
    %417 = vmatprep.subr.mxu0 0.0
    %418 = vmatpush1.msra.mxu0 0.0
    %419 = vmatprep.subr.mxu0 0.0
    %420 = vmatpush1.msra.mxu0 0.0
    %421 = vmatprep.subr.mxu0 0.0
    %422 = vmatpush1.msra.mxu0 0.0
    %423 = vmatprep.mubr.f32.mxu0 0.0
    %424 = vmatmul.mubr.f32.gmra.mrb[0].mxu0 %v352
    %v425 = vpop.f32.mrb[0].mxu0
    %v426 = vadd.f32 %v357, %v425
    %v427 = vpop.f32.mrb[0].mxu0
    %428 = vdwg.mxu0
    %v429 = vmax.f32 %v426, 0.0
    %v430 = vand.u32 2147483647, %v426
    %v431 = vsub.f32 0.0, %v430
    %v432 = vmul.f32 %v431, 1.442695
    %v433 = vpow.pop %v432
    %v434 = vadd.f32 %v433, 1.0
    %v435 = vlog2.pop %v434
    %v436 = vmul.f32 %v435, 0.6931472
    %v437 = vmul.f32 -0.5, %v433
    %v438 = vadd.f32 %v437, 1.0
    %v439 = vmul.f32 %v438, %v433
    %v440 = vand.u32 2147483647, %v433
    %vm441 = vcmp.lt.f32.partialorder %v440, 0.0004427343
    %v442 = vsel %vm441, %v439, %v436
    %v443 = vadd.f32 %v429, %v442
    %v444 = vld [vmem:[%s5] sm:$0xf]
    %v446 = vrot.slane %v444, 4
    %v448 = vmul.f32 %v443, %v446
    %v450 = vrot.slane %v448, 4
    %v452 = vadd.f32 %v426, %v450
    %v453 = vmul.f32 %v444, -0.5
    %v454 = vmul.f32 %v453, %v444
    %v455 = vlog2.pop %v443
    %v456 = vmul.f32 %v455, 0.6931472
    %v458 = vrot.slane %v456, 4
    %v460 = vsub.f32 %v454, %v458
    %v461 = vsub.f32 %v460, 0.9189385
    %v462 = vtanh.pop %v452
    %v463 = vmul.f32 %v462, %v462
    %v464 = vsub.f32 1.0, %v463
    %v465 = vadd.f32 %v464, 1e-07
    %v466 = vlog2.pop %v465
    %v467 = vmul.f32 %v466, 0.6931472
    %v468 = vsub.f32 %v461, %v467
    %vm469 = vcmask 60416
    %470 = vst.msk [vmem:[#allocation2] sm:$0xf] %vm469, %v462
    %471 = vst.msk [vmem:[#allocation2 + $0x4] sm:$0xf] %vm469, %v468
    // Predicated region
    $region26: #{tpu_custom_call.1} parent=1 // pred_check
      _
    $region27: #{tpu_custom_call.1} parent=1 // pred_check_branch
      %473 = sbr.rel (0) target = $region29
    $region28: #{tpu_custom_call.1} parent=1 // pred_region
      %s475 = ssub.s32 128, 128
      %476 = vsyncadd [#allocation3], %s475
      %s478 = sshll.u32 [#allocation2], 4
      %s479 = int_to_ptr.vmem [resolvable:$true] %s478
      %481 = dma.vmem_to_hbm [thread:$0]  %s479, 128, %s6, [#allocation3]
    $region29: #{tpu_custom_call.1} parent=1 // pred_fallthru
      _
    // Predicated region
    $region30: #{tpu_custom_call.1} parent=1 // pred_check
      _
    $region31: #{tpu_custom_call.1} parent=1 // pred_check_branch
      %483 = sbr.rel (0) target = $region33
    $region32: #{tpu_custom_call.1} parent=1 // pred_region
      %484 = dma.done [#allocation3], 128
    $region33: #{tpu_custom_call.1} parent=1 // pred_fallthru
      _
    %485 = vsyncpa [#allocation3], 1

</llo_original>
